<compile_context>
chip_gen: v7x
topology: tpu7x:2x2x1
jax: 0.10.0
libtpu: 0.0.40
codegen_flags: <defaults>
</compile_context>

<pallas_src>
import jax
import jax.numpy as jnp
from jax.experimental import pallas as pl
from jax.experimental.pallas import tpu as pltpu


LANE = 128   # last-dim tiles padded to multiples of this (native for v5e MXU)


def _round_up(n, m):
    return (n + m - 1) // m * m


# ----------------------------------------------------------------------------
# Single-cell kernel: one fused MXU matmul  [x | h] @ [W_ih^T ; W_hh^T] + bias
# ----------------------------------------------------------------------------
def rnn_cell_kernel(xh_ref, w_ref, b_ref, out_ref):
    acc = jnp.dot(xh_ref[...], w_ref[...], preferred_element_type=jnp.float32)
    acc = acc + b_ref[...].astype(jnp.float32)      # (1, Hp) broadcasts (VPU)
    out_ref[...] = jnp.tanh(acc).astype(out_ref.dtype)   # tanh on EUP


def prepare_rnn_params(w_ih, b_ih, w_hh, b_hh, *, compute_dtype=None):
    """One-time parameter prep (transpose + stack + pad).  Hoist out of loops.

    w_ih: [hidden, input_dim]   (PyTorch nn.Linear layout)
    w_hh: [hidden, hidden]
    Returns (w_stacked [Kp, Hp], bias [1, Hp] f32, dims).
    """
    hidden, input_dim = w_ih.shape
    k = input_dim + hidden
    kp = _round_up(k, LANE)
    hp = _round_up(hidden, LANE)

    w = jnp.concatenate([w_ih.T, w_hh.T], axis=0)            # [K, H]
    w = jnp.pad(w, ((0, kp - k), (0, hp - hidden)))          # [Kp, Hp]
    bias = jnp.pad(b_ih + b_hh, (0, hp - hidden)).reshape(1, hp).astype(jnp.float32)
    if compute_dtype is not None:
        w = w.astype(compute_dtype)
    return w, bias, (input_dim, hidden, kp, hp)


def custom_rnn_cell_prepared(x, h, w_stacked, bias, dims, *, max_block_b=512,
                             compute_dtype=None, vmem_limit_bytes=None):
    """One cell step with pre-prepared (padded, stacked) parameters."""
    input_dim, hidden, kp, hp = dims
    b = x.shape[0]
    sub = 16 if compute_dtype == jnp.bfloat16 else 8   # bf16 packs 16 sublanes

    # One fat batch block whenever it fits (grid=(1,)); only tile huge batches.
    block_b = min(_round_up(b, sub), _round_up(max_block_b, sub))
    bp = _round_up(max(b, block_b), block_b)

    xh = jnp.concatenate([x, h], axis=1)                      # [B, K]
    xh = jnp.pad(xh, ((0, bp - b), (0, kp - xh.shape[1])))    # [Bp, Kp]
    if compute_dtype is not None:
        xh = xh.astype(compute_dtype)

    grid = (bp // block_b,)
    dim_sem = ("parallel",) if grid[0] > 1 else ("arbitrary",)

    flops = 2 * bp * kp * hp
    bytes_accessed = (xh.size * xh.dtype.itemsize
                      + w_stacked.size * w_stacked.dtype.itemsize
                      + bias.size * bias.dtype.itemsize
                      + bp * hp * x.dtype.itemsize)

    out = pl.pallas_call(
        rnn_cell_kernel,
        out_shape=jax.ShapeDtypeStruct((bp, hp), x.dtype),
        grid_spec=pltpu.PrefetchScalarGridSpec(
            num_scalar_prefetch=0,
            grid=grid,
            in_specs=[
                pl.BlockSpec((block_b, kp), lambda i: (i, 0)),   # batch tile
                pl.BlockSpec((kp, hp), lambda i: (0, 0)),        # VMEM-resident W
                pl.BlockSpec((1, hp), lambda i: (0, 0)),         # VMEM-resident bias
            ],
            out_specs=pl.BlockSpec((block_b, hp), lambda i: (i, 0)),
        ),
        compiler_params=pltpu.CompilerParams(
            dimension_semantics=dim_sem,
            vmem_limit_bytes=vmem_limit_bytes),
        cost_estimate=pl.CostEstimate(
            flops=flops, transcendentals=bp * hp,
            bytes_accessed=bytes_accessed),
    )(xh, w_stacked, bias)

    # Padded hidden cols are exactly tanh(0)=0; padded batch rows dropped here.
    return out[:b, :hidden]


def custom_rnn_cell(x, h, w_ih, b_ih, w_hh, b_hh, *, compute_dtype=None):
    """Convenience wrapper matching the PyTorch forward(x, h) signature."""
    w_stacked, bias, dims = prepare_rnn_params(
        w_ih, b_ih, w_hh, b_hh, compute_dtype=compute_dtype)
    return custom_rnn_cell_prepared(x, h, w_stacked, bias, dims,
                                    compute_dtype=compute_dtype)


# ----------------------------------------------------------------------------
# Fused sequence kernel: grid=(T,), h carried in VMEM scratch, W_hh resident.
# Per-step work is only  tanh( h @ W_hh^T + xproj_t ).
# ----------------------------------------------------------------------------
def rnn_seq_kernel(xproj_ref, whh_ref, h0_ref, out_ref, h_scratch):
    t = pl.program_id(0)

    @pl.when(t == 0)
    def _():
        h_scratch[...] = h0_ref[...]          # f32 state, initialized once

    pre = jnp.dot(h_scratch[...].astype(whh_ref.dtype), whh_ref[...],
                  preferred_element_type=jnp.float32)
    h_new = jnp.tanh(pre + xproj_ref[0].astype(jnp.float32))
    h_scratch[...] = h_new
    out_ref[0] = h_new.astype(out_ref.dtype)


def custom_rnn_sequence(xs, h0, w_ih, b_ih, w_hh, b_hh, *, compute_dtype=None,
                        vmem_limit_bytes=None):
    """Run the cell over a whole sequence in ONE pallas_call.

    xs: [T, B, D], h0: [B, H].  Returns hidden states for all steps: [T, B, H].
    """
    T, B, D = xs.shape
    hidden = w_hh.shape[0]
    hp = _round_up(hidden, LANE)
    sub = 16 if compute_dtype == jnp.bfloat16 else 8
    bp = _round_up(B, sub)

    # Recurrent weight, transposed + padded, kept VMEM-resident for all T steps.
    whh = jnp.pad(w_hh.T, ((0, hp - hidden), (0, hp - hidden)))
    if compute_dtype is not None:
        whh = whh.astype(compute_dtype)

    # Non-recurrent input projection: one large MXU-efficient GEMM outside the
    # recurrence (both biases folded in).  Padded once into lane-dense layout.
    x_proj = jnp.einsum('tbd,hd->tbh', xs, w_ih) + (b_ih + b_hh)      # [T,B,H]
    x_proj = jnp.pad(x_proj.astype(jnp.float32),
                     ((0, 0), (0, bp - B), (0, hp - hidden)))         # [T,Bp,Hp]
    h0p = jnp.pad(h0.astype(jnp.float32),
                  ((0, bp - B), (0, hp - hidden)))                    # [Bp,Hp]

    out_dtype = xs.dtype
    flops = 2 * T * bp * hp * hp
    bytes_accessed = (x_proj.size * 4 + whh.size * whh.dtype.itemsize
                      + h0p.size * 4 + T * bp * hp * jnp.dtype(out_dtype).itemsize)

    out = pl.pallas_call(
        rnn_seq_kernel,
        out_shape=jax.ShapeDtypeStruct((T, bp, hp), out_dtype),
        grid_spec=pltpu.PrefetchScalarGridSpec(
            num_scalar_prefetch=0,
            grid=(T,),
            in_specs=[
                pl.BlockSpec((1, bp, hp), lambda t: (t, 0, 0)),   # xproj_t streams
                pl.BlockSpec((hp, hp), lambda t: (0, 0)),         # W_hh^T resident
                pl.BlockSpec((bp, hp), lambda t: (0, 0)),         # h0 resident
            ],
            out_specs=pl.BlockSpec((1, bp, hp), lambda t: (t, 0, 0)),
            scratch_shapes=[pltpu.VMEM((bp, hp), jnp.float32)],   # carried h
        ),
        compiler_params=pltpu.CompilerParams(
            dimension_semantics=("arbitrary",),        # true recurrence on T
            vmem_limit_bytes=vmem_limit_bytes),
        cost_estimate=pl.CostEstimate(
            flops=flops, transcendentals=T * bp * hp,
            bytes_accessed=bytes_accessed),
    )(x_proj, whh, h0p)

    # Unpad exactly once, after the whole sequence.
    return out[:, :B, :hidden]
    # TODO(synk): for DeepSpeech-sized hidden (~2048+) on v7x (64 MiB VMEM),
    # add an Hp grid axis (e.g. 512-wide N tiles) and use bf16 weights so the
    # resident W_hh^T fits; not needed at these demo shapes.


if __name__ == "__main__":
    # Small shapes consistent with the module: batch=16, input=16, hidden=32,
    # sequence length 8 for the fused-recurrence variant.
    B, D, H, T = 16, 16, 32, 8

    key = jax.random.PRNGKey(0)
    kx, kxs, kh, kw1, kb1, kw2, kb2 = jax.random.split(key, 7)

    bound_ih = 1.0 / (D ** 0.5)
    bound_hh = 1.0 / (H ** 0.5)
    x = jax.random.normal(kx, (B, D), dtype=jnp.float32)
    xs = jax.random.normal(kxs, (T, B, D), dtype=jnp.float32)
    h0 = jax.random.normal(kh, (B, H), dtype=jnp.float32)
    w_ih = jax.random.uniform(kw1, (H, D), minval=-bound_ih, maxval=bound_ih,
                              dtype=jnp.float32)
    b_ih = jax.random.uniform(kb1, (H,), minval=-bound_ih, maxval=bound_ih,
                              dtype=jnp.float32)
    w_hh = jax.random.uniform(kw2, (H, H), minval=-bound_hh, maxval=bound_hh,
                              dtype=jnp.float32)
    b_hh = jax.random.uniform(kb2, (H,), minval=-bound_hh, maxval=bound_hh,
                              dtype=jnp.float32)

    # --- 1. Single cell step (the module's forward), collapsed grid=(1,) ----
    w_stacked, bias, dims = prepare_rnn_params(w_ih, b_ih, w_hh, b_hh)
    out = custom_rnn_cell_prepared(x, h0, w_stacked, bias, dims)
    out = jax.block_until_ready(out)

    ref = jnp.tanh(x @ w_ih.T + b_ih + h0 @ w_hh.T + b_hh)
    assert out.shape == (B, H)
    assert jnp.allclose(out, ref, atol=1e-5, rtol=1e-5)

    # --- 2. Fused timestep loop (single pallas_call, W resident, h in VMEM) -
    seq_out = custom_rnn_sequence(xs, h0, w_ih, b_ih, w_hh, b_hh)
    seq_out = jax.block_until_ready(seq_out)

    h_ref = h0
    refs = []
    for t in range(T):
        h_ref = jnp.tanh(xs[t] @ w_ih.T + b_ih + h_ref @ w_hh.T + b_hh)
        refs.append(h_ref)
    ref_seq = jnp.stack(refs)
    assert seq_out.shape == (T, B, H)
    assert jnp.allclose(seq_out, ref_seq, atol=1e-4, rtol=1e-4)

    # --- 3. bf16 compute path (f32 accumulation), loose tolerance -----------
    seq_bf16 = custom_rnn_sequence(xs, h0, w_ih, b_ih, w_hh, b_hh,
                                   compute_dtype=jnp.bfloat16)
    seq_bf16 = jax.block_until_ready(seq_bf16)
    assert jnp.allclose(seq_bf16, ref_seq, atol=5e-2, rtol=5e-2)

    print("KERNEL_OK")
</pallas_src>

<mosaic_0001>
module attributes {stable_mosaic.version = 11 : i64} {
  func.func @rnn_cell_kernel(%arg0: i32, %arg1: memref<16x128xf32, #tpu.memory_space<vmem>>, %arg2: memref<128x128xf32, #tpu.memory_space<vmem>>, %arg3: memref<1x128xf32, #tpu.memory_space<vmem>>, %arg4: memref<16x128xf32, #tpu.memory_space<vmem>>) attributes {dimension_semantics = [#tpu.dimension_semantics<arbitrary>], iteration_bounds = array<i64: 1>, scalar_prefetch = 0 : i64, scratch_operands = 0 : i64, tpu.core_type = #tpu.core_type<tc>, window_params = [{transform_indices = @transform_0, window_bounds = array<i64: 16, 128>}, {pipeline_mode = #tpu.pipeline_mode<synchronous>, transform_indices = @transform_1, window_bounds = array<i64: 128, 128>}, {pipeline_mode = #tpu.pipeline_mode<synchronous>, transform_indices = @transform_2, window_bounds = array<i64: 1, 128>}, {transform_indices = @transform_3, window_bounds = array<i64: 16, 128>}]} {
    %c0 = arith.constant 0 : index
    %c0_0 = arith.constant 0 : index
    %0 = vector.load %arg1[%c0, %c0_0] : memref<16x128xf32, #tpu.memory_space<vmem>>, vector<16x128xf32>
    %c0_1 = arith.constant 0 : index
    %c0_2 = arith.constant 0 : index
    %1 = vector.load %arg2[%c0_1, %c0_2] : memref<128x128xf32, #tpu.memory_space<vmem>>, vector<128x128xf32>
    %cst = arith.constant dense<0.000000e+00> : vector<16x128xf32>
    %2 = tpu.matmul %0, %1, %cst {dimension_numbers = #tpu.dot_dimension_numbers<[1], [0], [0], [1], [0, 0, 1, 1], [], []>} : vector<16x128xf32>, vector<128x128xf32>, vector<16x128xf32> -> vector<16x128xf32>
    %c0_3 = arith.constant 0 : index
    %c0_4 = arith.constant 0 : index
    %3 = vector.load %arg3[%c0_3, %c0_4] : memref<1x128xf32, #tpu.memory_space<vmem>>, vector<1x128xf32>
    %4 = vector.broadcast %3 : vector<1x128xf32> to vector<16x128xf32>
    %5 = arith.addf %2, %4 : vector<16x128xf32>
    %6 = math.tanh %5 : vector<16x128xf32>
    %c0_5 = arith.constant 0 : index
    %c0_6 = arith.constant 0 : index
    %7 = vector.load %arg4[%c0_5, %c0_6] : memref<16x128xf32, #tpu.memory_space<vmem>>, vector<16x128xf32>
    tpu.vector_store %arg4[%c0_5, %c0_6], %6 {strides = array<i32>} : memref<16x128xf32, #tpu.memory_space<vmem>>, vector<16x128xf32>,
    return
  }
  func.func @transform_0(%arg0: i32) -> (i32, i32) {
    %c0_i32 = arith.constant 0 : i32
    %c0_i32_0 = arith.constant 0 : i32
    return %arg0, %c0_i32 : i32, i32
  }
  func.func @transform_1(%arg0: i32) -> (i32, i32) {
    %c0_i32 = arith.constant 0 : i32
    %c0_i32_0 = arith.constant 0 : i32
    %c0_i32_1 = arith.constant 0 : i32
    return %c0_i32, %c0_i32_0 : i32, i32
  }
  func.func @transform_2(%arg0: i32) -> (i32, i32) {
    %c0_i32 = arith.constant 0 : i32
    %c0_i32_0 = arith.constant 0 : i32
    %c0_i32_1 = arith.constant 0 : i32
    return %c0_i32, %c0_i32_0 : i32, i32
  }
  func.func @transform_3(%arg0: i32) -> (i32, i32) {
    %c0_i32 = arith.constant 0 : i32
    %c0_i32_0 = arith.constant 0 : i32
    return %arg0, %c0_i32 : i32, i32
  }
}

</mosaic_0001>

<llo_original>
// kernel: tpu_custom_call.1
$region0: #{tpu_custom_call.1}
  #allocation0 [shape = 'u32[]', space=smem, size = 0x4, offset = 0x4, fixed_abs, tag = 'smem constant byte address 0x4 - core index']
  #allocation1 [shape = 'u32[144,128]{1,0:T(1,128)}', space=vmem, size = 0x12000, scoped, tag = 'internal scratch']
  %s0 = inlined_call_operand.hbm [shape: f32[16,128], index: 0, kind: input, shape index: {}]
  %s1 = inlined_call_operand.hbm [shape: f32[128,128], index: 1, kind: input, shape index: {}]
  %s2 = inlined_call_operand.vmem [shape: f32[1,128], index: 2, kind: input, shape index: {}]
  %s3 = inlined_call_operand.hbm [shape: f32[16,128], index: 3, kind: output, shape index: {}]
  %s4 = sld [smem:[#allocation0]]
  $region30: #{tpu_custom_call.1} parent=0
    _
  %s6 = ssub.s32 1, %s4
  %s7 = scalar_select 0, %s6, %s4
  $region1: #{tpu_custom_call.1} parent=0
    #allocation2 [shape = 'u8[8192]{0}', space=vmem, size = 0x2000, scoped, tag = 'input window, operand 0, single buffered']
    #allocation3 [shape = 's32[1]{0}', space=sflag, size = 0x4, scoped, tag = 'scoped memory for tpu_custom_call.1']
    #allocation4 [shape = 's32[1]{0}', space=sflag, size = 0x4, scoped, tag = 'scoped memory for tpu_custom_call.1']
    #allocation5 [shape = 'u8[65536]{0}', space=vmem, size = 0x10000, scoped, tag = 'input window, operand 1, single buffered']
    #allocation6 [shape = 's32[1]{0}', space=sflag, size = 0x4, scoped, tag = 'scoped memory for tpu_custom_call.1']
    #allocation7 [shape = 'u8[8192]{0}', space=vmem, size = 0x2000, scoped, tag = 'output window, operand 0, single buffered']
    %8 = vsyncpa [#allocation3], 0
    %9 = vsyncpa [#allocation6], 0
    %10 = vsyncpa [#allocation4], 0
    // Predicated region
    $region2: #{tpu_custom_call.1} parent=1 // pred_check
      _
    $region3: #{tpu_custom_call.1} parent=1 // pred_check_branch
      %12 = sbr.rel (0) target = $region5
    $region4: #{tpu_custom_call.1} parent=1 // pred_region
      %s14 = ssub.s32 256, 256
      %15 = vsyncadd [#allocation3], %s14
      %s16 = sshll.u32 [#allocation2], 4
      %s17 = int_to_ptr.vmem [resolvable:$true] %s16
      %22 = dma.hbm_to_vmem [thread:$0]  %s0, 256, %s17, [#allocation3], 128, 128, 8
    $region5: #{tpu_custom_call.1} parent=1 // pred_fallthru
      _
    // Predicated region
    $region6: #{tpu_custom_call.1} parent=1 // pred_check
      _
    $region7: #{tpu_custom_call.1} parent=1 // pred_check_branch
      %24 = sbr.rel (0) target = $region9
    $region8: #{tpu_custom_call.1} parent=1 // pred_region
      %s26 = ssub.s32 2048, 2048
      %27 = vsyncadd [#allocation6], %s26
      %s28 = sshll.u32 [#allocation5], 4
      %s29 = int_to_ptr.vmem [resolvable:$true] %s28
      %34 = dma.hbm_to_vmem [thread:$0]  %s1, 2048, %s29, [#allocation6], 128, 128, 8
    $region9: #{tpu_custom_call.1} parent=1 // pred_fallthru
      _
    // Predicated region
    $region10: #{tpu_custom_call.1} parent=1 // pred_check
      _
    $region11: #{tpu_custom_call.1} parent=1 // pred_check_branch
      %36 = sbr.rel (0) target = $region13
    $region12: #{tpu_custom_call.1} parent=1 // pred_region
      _
    $region13: #{tpu_custom_call.1} parent=1 // pred_fallthru
      _
    // Predicated region
    $region14: #{tpu_custom_call.1} parent=1 // pred_check
      _
    $region15: #{tpu_custom_call.1} parent=1 // pred_check_branch
      %38 = sbr.rel (0) target = $region17
    $region16: #{tpu_custom_call.1} parent=1 // pred_region
      %39 = dma.done [#allocation3], 256
    $region17: #{tpu_custom_call.1} parent=1 // pred_fallthru
      _
    // Predicated region
    $region18: #{tpu_custom_call.1} parent=1 // pred_check
      _
    $region19: #{tpu_custom_call.1} parent=1 // pred_check_branch
      %41 = sbr.rel (0) target = $region21
    $region20: #{tpu_custom_call.1} parent=1 // pred_region
      %42 = dma.done [#allocation6], 2048
    $region21: #{tpu_custom_call.1} parent=1 // pred_fallthru
      _
    %v43 = vld [vmem:[#allocation2] sm:$0xff]
    %v44 = vld [vmem:[#allocation2 + $0x8] sm:$0xff]
    %v45 = vld [vmem:[#allocation5] sm:$0xff]
    %v46 = vld [vmem:[#allocation5 + $0x8] sm:$0xff]
    %v47 = vld [vmem:[#allocation5 + $0x10] sm:$0xff]
    %v48 = vld [vmem:[#allocation5 + $0x18] sm:$0xff]
    %v49 = vld [vmem:[#allocation5 + $0x20] sm:$0xff]
    %v50 = vld [vmem:[#allocation5 + $0x28] sm:$0xff]
    %v51 = vld [vmem:[#allocation5 + $0x30] sm:$0xff]
    %v52 = vld [vmem:[#allocation5 + $0x38] sm:$0xff]
    %v53 = vld [vmem:[#allocation5 + $0x40] sm:$0xff]
    %v54 = vld [vmem:[#allocation5 + $0x48] sm:$0xff]
    %v55 = vld [vmem:[#allocation5 + $0x50] sm:$0xff]
    %v56 = vld [vmem:[#allocation5 + $0x58] sm:$0xff]
    %v57 = vld [vmem:[#allocation5 + $0x60] sm:$0xff]
    %v58 = vld [vmem:[#allocation5 + $0x68] sm:$0xff]
    %v59 = vld [vmem:[#allocation5 + $0x70] sm:$0xff]
    %v60 = vld [vmem:[#allocation5 + $0x78] sm:$0xff]
    %v61 = vld [vmem:[%s2] sm:$0x1]
    %v63 = vlaneseq
    %v64 = vshrl.u32 %v63, 7
    %v65 = vsub.s32 0, %v64
    %v66 = vrot.slane %v61, %v65
    %68 = vmatprep.subr.mxu0 0.0
    %69 = vmatpush1.msra.mxu0 %v45
    %70 = vmatprep.subr.mxu0 0.0
    %71 = vmatpush1.msra.mxu0 %v46
    %72 = vmatprep.subr.mxu0 0.0
    %73 = vmatpush1.msra.mxu0 %v47
    %74 = vmatprep.subr.mxu0 0.0
    %75 = vmatpush1.msra.mxu0 %v48
    %76 = vmatprep.subr.mxu0 0.0
    %77 = vmatpush1.msra.mxu0 %v49
    %78 = vmatprep.subr.mxu0 0.0
    %79 = vmatpush1.msra.mxu0 %v50
    %80 = vmatprep.subr.mxu0 0.0
    %81 = vmatpush1.msra.mxu0 %v51
    %82 = vmatprep.subr.mxu0 0.0
    %83 = vmatpush1.msra.mxu0 %v52
    %84 = vmatprep.subr.mxu0 0.0
    %85 = vmatpush1.msra.mxu0 %v53
    %86 = vmatprep.subr.mxu0 0.0
    %87 = vmatpush1.msra.mxu0 %v54
    %88 = vmatprep.subr.mxu0 0.0
    %89 = vmatpush1.msra.mxu0 %v55
    %90 = vmatprep.subr.mxu0 0.0
    %91 = vmatpush1.msra.mxu0 %v56
    %92 = vmatprep.subr.mxu0 0.0
    %93 = vmatpush1.msra.mxu0 %v57
    %94 = vmatprep.subr.mxu0 0.0
    %95 = vmatpush1.msra.mxu0 %v58
    %96 = vmatprep.subr.mxu0 0.0
    %97 = vmatpush1.msra.mxu0 %v59
    %98 = vmatprep.subr.mxu0 0.0
    %99 = vmatpush1.msra.mxu0 %v60
    %100 = vmatprep.subr.mxu0 0.0
    %101 = vmatpush1.msra.mxu0 0.0
    %102 = vmatprep.subr.mxu0 0.0
    %103 = vmatpush1.msra.mxu0 0.0
    %104 = vmatprep.subr.mxu0 0.0
    %105 = vmatpush1.msra.mxu0 0.0
    %106 = vmatprep.subr.mxu0 0.0
    %107 = vmatpush1.msra.mxu0 0.0
    %108 = vmatprep.subr.mxu0 0.0
    %109 = vmatpush1.msra.mxu0 0.0
    %110 = vmatprep.subr.mxu0 0.0
    %111 = vmatpush1.msra.mxu0 0.0
    %112 = vmatprep.subr.mxu0 0.0
    %113 = vmatpush1.msra.mxu0 0.0
    %114 = vmatprep.subr.mxu0 0.0
    %115 = vmatpush1.msra.mxu0 0.0
    %116 = vmatprep.subr.mxu0 0.0
    %117 = vmatpush1.msra.mxu0 0.0
    %118 = vmatprep.subr.mxu0 0.0
    %119 = vmatpush1.msra.mxu0 0.0
    %120 = vmatprep.subr.mxu0 0.0
    %121 = vmatpush1.msra.mxu0 0.0
    %122 = vmatprep.subr.mxu0 0.0
    %123 = vmatpush1.msra.mxu0 0.0
    %124 = vmatprep.subr.mxu0 0.0
    %125 = vmatpush1.msra.mxu0 0.0
    %126 = vmatprep.subr.mxu0 0.0
    %127 = vmatpush1.msra.mxu0 0.0
    %128 = vmatprep.subr.mxu0 0.0
    %129 = vmatpush1.msra.mxu0 0.0
    %130 = vmatprep.subr.mxu0 0.0
    %131 = vmatpush1.msra.mxu0 0.0
    %132 = vmatprep.mubr.f32.mxu0 0.0
    %133 = vmatmul.mubr.f32.gmra.mrb[0].mxu0 %v43
    %v134 = vpop.f32.mrb[0].mxu0
    %v135 = vadd.f32 %v66, %v134
    %v136 = vpop.f32.mrb[0].mxu0
    %137 = vmatprep.mubr.f32.mxu0 0.0
    %138 = vmatmul.mubr.f32.gmra.mrb[0].mxu0 %v44
    %v139 = vpop.f32.mrb[0].mxu0
    %v140 = vadd.f32 %v66, %v139
    %v141 = vpop.f32.mrb[0].mxu0
    %142 = vdwg.mxu0
    %v143 = vtanh.pop %v135
    %v144 = vtanh.pop %v140
    %145 = vst [vmem:[#allocation7] sm:$0xff] %v143
    %146 = vst [vmem:[#allocation7 + $0x8] sm:$0xff] %v144
    // Predicated region
    $region22: #{tpu_custom_call.1} parent=1 // pred_check
      _
    $region23: #{tpu_custom_call.1} parent=1 // pred_check_branch
      %148 = sbr.rel (0) target = $region25
    $region24: #{tpu_custom_call.1} parent=1 // pred_region
      %s150 = ssub.s32 256, 256
      %151 = vsyncadd [#allocation4], %s150
      %s152 = sshll.u32 [#allocation7], 4
      %s153 = int_to_ptr.vmem [resolvable:$true] %s152
      %158 = dma.vmem_to_hbm [thread:$0]  %s153, 256, %s3, [#allocation4], 128, 128, 8
    $region25: #{tpu_custom_call.1} parent=1 // pred_fallthru
      _
    // Predicated region
    $region26: #{tpu_custom_call.1} parent=1 // pred_check
      _
    $region27: #{tpu_custom_call.1} parent=1 // pred_check_branch
      %160 = sbr.rel (0) target = $region29
    $region28: #{tpu_custom_call.1} parent=1 // pred_region
      %161 = dma.done [#allocation4], 256
    $region29: #{tpu_custom_call.1} parent=1 // pred_fallthru
      _
    %162 = vsyncpa [#allocation3], 1
    %163 = vsyncpa [#allocation6], 1
    %164 = vsyncpa [#allocation4], 1

</llo_original>
